<compile_context>
chip_gen: v7x
topology: tpu7x:2x2x1
jax: 0.10.0
libtpu: 0.0.40
codegen_flags: <defaults>
</compile_context>

<pallas_src>
import functools
import math

import jax
import jax.numpy as jnp
from jax.experimental import pallas as pl
from jax.experimental.pallas import tpu as pltpu

HIDDEN = 128
SUBLANE = 8


def _round_up(x, m):
    return ((x + m - 1) // m) * m


def actor_critic_kernel(x_ref, w1_ref, b1_ref, w2_ref, b2_ref, wh_ref, bh_ref,
                        out_ref, *, output_dim):
    """One batch tile.

    Output layout (lane width = output_dim + 1):
      out[:, :output_dim] = softmax(actor logits)
      out[:, output_dim]  = critic value
    """
    cdt = w1_ref.dtype
    x = x_ref[...].astype(cdt)                    # cast in vregs -> bf16 MXU path

    # fc1 + relu (f32 accumulation on the MXU).
    h1 = jnp.dot(x, w1_ref[...], preferred_element_type=jnp.float32) + b1_ref[...]
    h1 = jnp.maximum(h1, 0.0)

    # fc2 + relu
    h2 = jnp.dot(h1.astype(cdt), w2_ref[...],
                 preferred_element_type=jnp.float32) + b2_ref[...]
    h2 = jnp.maximum(h2, 0.0)

    # Fused actor|critic head: [tb, 128] @ [128, output_dim + 1]
    logits = jnp.dot(h2.astype(cdt), wh_ref[...],
                     preferred_element_type=jnp.float32) + bh_ref[...]

    col = jax.lax.broadcasted_iota(jnp.int32, logits.shape, dimension=1)
    is_actor = col < output_dim

    # Numerically-stable softmax restricted to the actor lanes.
    masked = jnp.where(is_actor, logits, -jnp.inf)
    m = jnp.max(masked, axis=-1, keepdims=True)
    e = jnp.exp(masked - m)                       # critic lane -> exp(-inf) = 0
    denom = jnp.sum(e, axis=-1, keepdims=True)
    probs = e / denom                             # exact divide: rows sum to 1

    # Pack actor probs + critic value into one narrow store.
    out_ref[...] = jnp.where(is_actor, probs, logits).astype(out_ref.dtype)


def actor_critic_forward(x, params, *, block_b=2048, compute_dtype=jnp.bfloat16):
    """x: [B, input_dim] (any float dtype). params: dict from init_params.
    Returns (actor [B, output_dim] f32, critic [B, 1] f32)."""
    B, input_dim = x.shape
    output_dim = params["wa"].shape[1]
    head_w = output_dim + 1                       # actor probs | critic value

    # Batch tile: sublane aligned, capped at ceil(B/2) so large batches give
    # >=2 grid steps (keeps both v7x TensorCores busy) and VMEM stays small.
    tb = min(block_b, _round_up(-(-B // 2), SUBLANE))
    tb = max(tb, SUBLANE)
    grid = (pl.cdiv(B, tb),)

    f32 = jnp.float32
    cdt = compute_dtype

    # Weights cast once to the MXU input dtype (tiny, stay resident in VMEM).
    w1 = params["w1"].astype(cdt)                                   # [in, 128]
    w2 = params["w2"].astype(cdt)                                   # [128, 128]
    wh = jnp.concatenate([params["wa"], params["wc"]], 1).astype(cdt)  # [128, head_w]
    bh = jnp.concatenate([params["ba"], params["bc"]], 1).astype(f32)  # [1, head_w]
    b1 = params["b1"].astype(f32)
    b2 = params["b2"].astype(f32)

    def batch_block(shape):          # blocked along the batch axis
        return pl.BlockSpec(shape, lambda i: (i, 0))

    def resident(shape):             # constant index_map -> DMA'd once, resident
        return pl.BlockSpec(shape, lambda i: (0, 0))

    in_specs = [
        batch_block((tb, input_dim)),    # x tile (natural K, no padding / copy)
        resident((input_dim, HIDDEN)),   # W1
        resident((1, HIDDEN)),           # b1
        resident((HIDDEN, HIDDEN)),      # W2
        resident((1, HIDDEN)),           # b2
        resident((HIDDEN, head_w)),      # fused head weights (Wa | Wc)
        resident((1, head_w)),           # fused head bias    (ba | bc)
    ]
    out_specs = batch_block((tb, head_w))
    out_shape = jax.ShapeDtypeStruct((B, head_w), f32)

    out = pl.pallas_call(
        functools.partial(actor_critic_kernel, output_dim=output_dim),
        grid=grid,
        in_specs=in_specs,
        out_specs=out_specs,
        out_shape=out_shape,
        compiler_params=pltpu.CompilerParams(
            dimension_semantics=("parallel",)),   # v7x: shard batch tiles over 2 TCs
    )(x, w1, b1, w2, b2, wh, bh)

    actor = out[:, :output_dim]
    critic = out[:, output_dim:output_dim + 1]
    return actor, critic


def init_params(key, input_dim, output_dim):
    """nn.Linear-style init: U(-1/sqrt(fan_in), 1/sqrt(fan_in)).
    Weights stored [in_features, out_features]; biases [1, out_features]."""
    def linear(key, fan_in, fan_out):
        kw, kb = jax.random.split(key)
        bound = 1.0 / math.sqrt(fan_in)
        w = jax.random.uniform(kw, (fan_in, fan_out), jnp.float32, -bound, bound)
        b = jax.random.uniform(kb, (1, fan_out), jnp.float32, -bound, bound)
        return w, b

    k1, k2, k3, k4 = jax.random.split(key, 4)
    w1, b1 = linear(k1, input_dim, HIDDEN)
    w2, b2 = linear(k2, HIDDEN, HIDDEN)
    wa, ba = linear(k3, HIDDEN, output_dim)
    wc, bc = linear(k4, HIDDEN, 1)
    return {"w1": w1, "b1": b1, "w2": w2, "b2": b2,
            "wa": wa, "ba": ba, "wc": wc, "bc": bc}


def reference_forward(x, p):
    h1 = jax.nn.relu(x @ p["w1"] + p["b1"])
    h2 = jax.nn.relu(h1 @ p["w2"] + p["b2"])
    actor = jax.nn.softmax(h2 @ p["wa"] + p["ba"], axis=-1)
    critic = h2 @ p["wc"] + p["bc"]
    return actor, critic


if __name__ == "__main__":
    key = jax.random.PRNGKey(0)
    k_x, k_p = jax.random.split(key)

    batch = 8
    input_dim = 16   # environment observation dimension
    output_dim = 4   # number of discrete actions

    x = jax.random.normal(k_x, (batch, input_dim), dtype=jnp.float32)
    params = init_params(k_p, input_dim, output_dim)
    actor_ref, critic_ref = reference_forward(x, params)

    # f32 compute path: should match the pure-JAX/PyTorch f32 reference tightly.
    actor_f32, critic_f32 = actor_critic_forward(x, params,
                                                 compute_dtype=jnp.float32)
    jax.block_until_ready((actor_f32, critic_f32))
    assert actor_f32.shape == (batch, output_dim)
    assert critic_f32.shape == (batch, 1)
    assert jnp.allclose(actor_f32, actor_ref, atol=1e-4, rtol=1e-4)
    assert jnp.allclose(critic_f32, critic_ref, atol=1e-4, rtol=1e-4)

    # Default (bf16 matmul inputs, f32 accumulation): relaxed tolerance.
    actor_out, critic_out = actor_critic_forward(x, params)
    jax.block_until_ready((actor_out, critic_out))
    assert actor_out.shape == (batch, output_dim)
    assert critic_out.shape == (batch, 1)
    assert jnp.allclose(actor_out, actor_ref, atol=2e-2, rtol=2e-2)
    assert jnp.allclose(critic_out, critic_ref, atol=5e-2, rtol=5e-2)
    # softmax rows sum to ~1 (exact divide -> f32-precision normalization)
    assert jnp.allclose(jnp.sum(actor_out, axis=-1), 1.0, atol=1e-3)

    print("KERNEL_OK")
</pallas_src>

<mosaic_0001>
module attributes {stable_mosaic.version = 11 : i64} {
  func.func @actor_critic_kernel(%arg0: i32, %arg1: memref<8x16xf32, #tpu.memory_space<vmem>>, %arg2: memref<16x128xf32, #tpu.memory_space<vmem>>, %arg3: memref<1x128xf32, #tpu.memory_space<vmem>>, %arg4: memref<128x128xf32, #tpu.memory_space<vmem>>, %arg5: memref<1x128xf32, #tpu.memory_space<vmem>>, %arg6: memref<128x5xf32, #tpu.memory_space<vmem>>, %arg7: memref<1x5xf32, #tpu.memory_space<vmem>>, %arg8: memref<8x5xf32, #tpu.memory_space<vmem>>) attributes {dimension_semantics = [#tpu.dimension_semantics<parallel>], iteration_bounds = array<i64: 1>, scalar_prefetch = 0 : i64, scratch_operands = 0 : i64, tpu.core_type = #tpu.core_type<tc>, window_params = [{transform_indices = @transform_0, window_bounds = array<i64: 8, 16>}, {pipeline_mode = #tpu.pipeline_mode<synchronous>, transform_indices = @transform_1, window_bounds = array<i64: 16, 128>}, {pipeline_mode = #tpu.pipeline_mode<synchronous>, transform_indices = @transform_2, window_bounds = array<i64: 1, 128>}, {pipeline_mode = #tpu.pipeline_mode<synchronous>, transform_indices = @transform_3, window_bounds = array<i64: 128, 128>}, {pipeline_mode = #tpu.pipeline_mode<synchronous>, transform_indices = @transform_4, window_bounds = array<i64: 1, 128>}, {pipeline_mode = #tpu.pipeline_mode<synchronous>, transform_indices = @transform_5, window_bounds = array<i64: 128, 5>}, {pipeline_mode = #tpu.pipeline_mode<synchronous>, transform_indices = @transform_6, window_bounds = array<i64: 1, 5>}, {transform_indices = @transform_7, window_bounds = array<i64: 8, 5>}]} {
    %c0 = arith.constant 0 : index
    %c0_0 = arith.constant 0 : index
    %0 = vector.load %arg1[%c0, %c0_0] : memref<8x16xf32, #tpu.memory_space<vmem>>, vector<8x16xf32>
    %c0_1 = arith.constant 0 : index
    %c0_2 = arith.constant 0 : index
    %1 = vector.load %arg2[%c0_1, %c0_2] : memref<16x128xf32, #tpu.memory_space<vmem>>, vector<16x128xf32>
    %cst = arith.constant dense<0.000000e+00> : vector<8x128xf32>
    %2 = tpu.matmul %0, %1, %cst {dimension_numbers = #tpu.dot_dimension_numbers<[1], [0], [0], [1], [0, 0, 1, 1], [], []>} : vector<8x16xf32>, vector<16x128xf32>, vector<8x128xf32> -> vector<8x128xf32>
    %c0_3 = arith.constant 0 : index
    %c0_4 = arith.constant 0 : index
    %3 = vector.load %arg3[%c0_3, %c0_4] : memref<1x128xf32, #tpu.memory_space<vmem>>, vector<1x128xf32>
    %4 = vector.broadcast %3 : vector<1x128xf32> to vector<8x128xf32>
    %5 = arith.addf %2, %4 : vector<8x128xf32>
    %cst_5 = arith.constant 0.000000e+00 : f32
    %6 = vector.broadcast %cst_5 : f32 to vector<8x128xf32>
    %7 = arith.maximumf %5, %6 : vector<8x128xf32>
    %c0_6 = arith.constant 0 : index
    %c0_7 = arith.constant 0 : index
    %8 = vector.load %arg4[%c0_6, %c0_7] : memref<128x128xf32, #tpu.memory_space<vmem>>, vector<128x128xf32>
    %cst_8 = arith.constant dense<0.000000e+00> : vector<8x128xf32>
    %9 = tpu.matmul %7, %8, %cst_8 {dimension_numbers = #tpu.dot_dimension_numbers<[1], [0], [0], [1], [0, 0, 1, 1], [], []>} : vector<8x128xf32>, vector<128x128xf32>, vector<8x128xf32> -> vector<8x128xf32>
    %c0_9 = arith.constant 0 : index
    %c0_10 = arith.constant 0 : index
    %10 = vector.load %arg5[%c0_9, %c0_10] : memref<1x128xf32, #tpu.memory_space<vmem>>, vector<1x128xf32>
    %11 = vector.broadcast %10 : vector<1x128xf32> to vector<8x128xf32>
    %12 = arith.addf %9, %11 : vector<8x128xf32>
    %cst_11 = arith.constant 0.000000e+00 : f32
    %13 = vector.broadcast %cst_11 : f32 to vector<8x128xf32>
    %14 = arith.maximumf %12, %13 : vector<8x128xf32>
    %c0_12 = arith.constant 0 : index
    %c0_13 = arith.constant 0 : index
    %15 = vector.load %arg6[%c0_12, %c0_13] : memref<128x5xf32, #tpu.memory_space<vmem>>, vector<128x5xf32>
    %cst_14 = arith.constant dense<0.000000e+00> : vector<8x5xf32>
    %16 = tpu.matmul %14, %15, %cst_14 {dimension_numbers = #tpu.dot_dimension_numbers<[1], [0], [0], [1], [0, 0, 1, 1], [], []>} : vector<8x128xf32>, vector<128x5xf32>, vector<8x5xf32> -> vector<8x5xf32>
    %c0_15 = arith.constant 0 : index
    %c0_16 = arith.constant 0 : index
    %17 = vector.load %arg7[%c0_15, %c0_16] : memref<1x5xf32, #tpu.memory_space<vmem>>, vector<1x5xf32>
    %18 = vector.broadcast %17 : vector<1x5xf32> to vector<8x5xf32>
    %19 = arith.addf %16, %18 : vector<8x5xf32>
    %20 = tpu.iota {dimensions = array<i32: 1>} : vector<8x5xi32>
    %c4_i32 = arith.constant 4 : i32
    %21 = vector.broadcast %c4_i32 : i32 to vector<8x5xi32>
    %22 = arith.cmpi slt, %20, %21 : vector<8x5xi32>
    %cst_17 = arith.constant 0xFF800000 : f32
    %23 = vector.broadcast %cst_17 : f32 to vector<8x5xf32>
    %24 = arith.select %22, %19, %23 : vector<8x5xi1>, vector<8x5xf32>
    %cst_18 = arith.constant dense<0xFF800000> : vector<8xf32>
    %25 = vector.multi_reduction <maximumf>, %24, %cst_18 [1] : vector<8x5xf32> to vector<8xf32>
    %26 = vector.shape_cast %25 : vector<8xf32> to vector<8x1xf32>
    %27 = vector.broadcast %26 : vector<8x1xf32> to vector<8x5xf32>
    %28 = arith.subf %24, %27 : vector<8x5xf32>
    %29 = math.exp %28 : vector<8x5xf32>
    %cst_19 = arith.constant dense<0.000000e+00> : vector<8xf32>
    %30 = vector.multi_reduction <add>, %29, %cst_19 [1] : vector<8x5xf32> to vector<8xf32>
    %31 = vector.shape_cast %30 : vector<8xf32> to vector<8x1xf32>
    %32 = vector.broadcast %31 : vector<8x1xf32> to vector<8x5xf32>
    %33 = arith.divf %29, %32 : vector<8x5xf32>
    %34 = arith.select %22, %33, %19 : vector<8x5xi1>, vector<8x5xf32>
    %c0_20 = arith.constant 0 : index
    %c0_21 = arith.constant 0 : index
    %35 = vector.load %arg8[%c0_20, %c0_21] : memref<8x5xf32, #tpu.memory_space<vmem>>, vector<8x5xf32>
    tpu.vector_store %arg8[%c0_20, %c0_21], %34 {strides = array<i32>} : memref<8x5xf32, #tpu.memory_space<vmem>>, vector<8x5xf32>,
    return
  }
  func.func @transform_0(%arg0: i32) -> (i32, i32) {
    %c0_i32 = arith.constant 0 : i32
    %c0_i32_0 = arith.constant 0 : i32
    return %arg0, %c0_i32 : i32, i32
  }
  func.func @transform_1(%arg0: i32) -> (i32, i32) {
    %c0_i32 = arith.constant 0 : i32
    %c0_i32_0 = arith.constant 0 : i32
    %c0_i32_1 = arith.constant 0 : i32
    return %c0_i32, %c0_i32_0 : i32, i32
  }
  func.func @transform_2(%arg0: i32) -> (i32, i32) {
    %c0_i32 = arith.constant 0 : i32
    %c0_i32_0 = arith.constant 0 : i32
    %c0_i32_1 = arith.constant 0 : i32
    return %c0_i32, %c0_i32_0 : i32, i32
  }
  func.func @transform_3(%arg0: i32) -> (i32, i32) {
    %c0_i32 = arith.constant 0 : i32
    %c0_i32_0 = arith.constant 0 : i32
    %c0_i32_1 = arith.constant 0 : i32
    return %c0_i32, %c0_i32_0 : i32, i32
  }
  func.func @transform_4(%arg0: i32) -> (i32, i32) {
    %c0_i32 = arith.constant 0 : i32
    %c0_i32_0 = arith.constant 0 : i32
    %c0_i32_1 = arith.constant 0 : i32
    return %c0_i32, %c0_i32_0 : i32, i32
  }
  func.func @transform_5(%arg0: i32) -> (i32, i32) {
    %c0_i32 = arith.constant 0 : i32
    %c0_i32_0 = arith.constant 0 : i32
    %c0_i32_1 = arith.constant 0 : i32
    return %c0_i32, %c0_i32_0 : i32, i32
  }
  func.func @transform_6(%arg0: i32) -> (i32, i32) {
    %c0_i32 = arith.constant 0 : i32
    %c0_i32_0 = arith.constant 0 : i32
    %c0_i32_1 = arith.constant 0 : i32
    return %c0_i32, %c0_i32_0 : i32, i32
  }
  func.func @transform_7(%arg0: i32) -> (i32, i32) {
    %c0_i32 = arith.constant 0 : i32
    %c0_i32_0 = arith.constant 0 : i32
    return %arg0, %c0_i32 : i32, i32
  }
}

</mosaic_0001>

<llo_original>
// kernel: tpu_custom_call.1
$region0: #{tpu_custom_call.1}
  #allocation0 [shape = 'u32[]', space=smem, size = 0x4, offset = 0x4, fixed_abs, tag = 'smem constant byte address 0x4 - core index']
  #allocation1 [shape = 'u32[144,128]{1,0:T(1,128)}', space=vmem, size = 0x12000, scoped, tag = 'internal scratch']
  %s0 = inlined_call_operand.hbm [shape: f32[8,16], index: 0, kind: input, shape index: {}]
  %s1 = inlined_call_operand.vmem [shape: f32[16,128], index: 1, kind: input, shape index: {}]
  %s2 = inlined_call_operand.vmem [shape: f32[1,128], index: 2, kind: input, shape index: {}]
  %s3 = inlined_call_operand.vmem [shape: f32[128,128], index: 3, kind: input, shape index: {}]
  %s4 = inlined_call_operand.vmem [shape: f32[1,128], index: 4, kind: input, shape index: {}]
  %s5 = inlined_call_operand.vmem [shape: f32[128,5], index: 5, kind: input, shape index: {}]
  %s6 = inlined_call_operand.vmem [shape: f32[1,5], index: 6, kind: input, shape index: {}]
  %s7 = inlined_call_operand.hbm [shape: f32[8,5], index: 7, kind: output, shape index: {}]
  %s8 = sld [smem:[#allocation0]]
  $region42: #{tpu_custom_call.1} parent=0
    _
  %s10 = ssub.s32 1, %s8
  %s11 = scalar_select 0, %s10, %s8
  $region1: #{tpu_custom_call.1} parent=0
    #allocation2 [shape = 'u8[4096]{0}', space=vmem, size = 0x1000, scoped, tag = 'input window, operand 0, single buffered']
    #allocation3 [shape = 's32[1]{0}', space=sflag, size = 0x4, scoped, tag = 'scoped memory for tpu_custom_call.1']
    #allocation4 [shape = 's32[1]{0}', space=sflag, size = 0x4, scoped, tag = 'scoped memory for tpu_custom_call.1']
    #allocation5 [shape = 'u8[4096]{0}', space=vmem, size = 0x1000, scoped, tag = 'output window, operand 0, single buffered']
    %12 = vsyncpa [#allocation3], 0
    %13 = vsyncpa [#allocation4], 0
    // Predicated region
    $region2: #{tpu_custom_call.1} parent=1 // pred_check
      _
    $region3: #{tpu_custom_call.1} parent=1 // pred_check_branch
      %15 = sbr.rel (0) target = $region5
    $region4: #{tpu_custom_call.1} parent=1 // pred_region
      %s17 = ssub.s32 128, 128
      %18 = vsyncadd [#allocation3], %s17
      %s20 = sshll.u32 [#allocation2], 4
      %s21 = int_to_ptr.vmem [resolvable:$true] %s20
      %23 = dma.hbm_to_vmem [thread:$0]  %s0, 128, %s21, [#allocation3]
    $region5: #{tpu_custom_call.1} parent=1 // pred_fallthru
      _
    // Predicated region
    $region6: #{tpu_custom_call.1} parent=1 // pred_check
      _
    $region7: #{tpu_custom_call.1} parent=1 // pred_check_branch
      %25 = sbr.rel (0) target = $region9
    $region8: #{tpu_custom_call.1} parent=1 // pred_region
      _
    $region9: #{tpu_custom_call.1} parent=1 // pred_fallthru
      _
    // Predicated region
    $region10: #{tpu_custom_call.1} parent=1 // pred_check
      _
    $region11: #{tpu_custom_call.1} parent=1 // pred_check_branch
      %27 = sbr.rel (0) target = $region13
    $region12: #{tpu_custom_call.1} parent=1 // pred_region
      _
    $region13: #{tpu_custom_call.1} parent=1 // pred_fallthru
      _
    // Predicated region
    $region14: #{tpu_custom_call.1} parent=1 // pred_check
      _
    $region15: #{tpu_custom_call.1} parent=1 // pred_check_branch
      %29 = sbr.rel (0) target = $region17
    $region16: #{tpu_custom_call.1} parent=1 // pred_region
      _
    $region17: #{tpu_custom_call.1} parent=1 // pred_fallthru
      _
    // Predicated region
    $region18: #{tpu_custom_call.1} parent=1 // pred_check
      _
    $region19: #{tpu_custom_call.1} parent=1 // pred_check_branch
      %31 = sbr.rel (0) target = $region21
    $region20: #{tpu_custom_call.1} parent=1 // pred_region
      _
    $region21: #{tpu_custom_call.1} parent=1 // pred_fallthru
      _
    // Predicated region
    $region22: #{tpu_custom_call.1} parent=1 // pred_check
      _
    $region23: #{tpu_custom_call.1} parent=1 // pred_check_branch
      %33 = sbr.rel (0) target = $region25
    $region24: #{tpu_custom_call.1} parent=1 // pred_region
      _
    $region25: #{tpu_custom_call.1} parent=1 // pred_fallthru
      _
    // Predicated region
    $region26: #{tpu_custom_call.1} parent=1 // pred_check
      _
    $region27: #{tpu_custom_call.1} parent=1 // pred_check_branch
      %35 = sbr.rel (0) target = $region29
    $region28: #{tpu_custom_call.1} parent=1 // pred_region
      _
    $region29: #{tpu_custom_call.1} parent=1 // pred_fallthru
      _
    // Predicated region
    $region30: #{tpu_custom_call.1} parent=1 // pred_check
      _
    $region31: #{tpu_custom_call.1} parent=1 // pred_check_branch
      %37 = sbr.rel (0) target = $region33
    $region32: #{tpu_custom_call.1} parent=1 // pred_region
      %38 = dma.done [#allocation3], 128
    $region33: #{tpu_custom_call.1} parent=1 // pred_fallthru
      _
    %v39 = vld [vmem:[#allocation2] sm:$0xff]
    %v40 = vld [vmem:[%s1] sm:$0xff]
    %v41 = vld [vmem:[%s1 + $0x8] sm:$0xff]
    %v42 = vld [vmem:[%s2] sm:$0x1]
    %v44 = vlaneseq
    %v45 = vshrl.u32 %v44, 7
    %v46 = vsub.s32 0, %v45
    %v47 = vrot.slane %v42, %v46
    %vm49 = vcmask 130048
    %v51 = vsel %vm49, %v39, 0
    %53 = vmatprep.subr.mxu0 0.0
    %54 = vmatpush1.msra.mxu0 %v40
    %55 = vmatprep.subr.mxu0 0.0
    %56 = vmatpush1.msra.mxu0 %v41
    %57 = vmatprep.subr.mxu0 0.0
    %58 = vmatpush1.msra.mxu0 0.0
    %59 = vmatprep.subr.mxu0 0.0
    %60 = vmatpush1.msra.mxu0 0.0
    %61 = vmatprep.subr.mxu0 0.0
    %62 = vmatpush1.msra.mxu0 0.0
    %63 = vmatprep.subr.mxu0 0.0
    %64 = vmatpush1.msra.mxu0 0.0
    %65 = vmatprep.subr.mxu0 0.0
    %66 = vmatpush1.msra.mxu0 0.0
    %67 = vmatprep.subr.mxu0 0.0
    %68 = vmatpush1.msra.mxu0 0.0
    %69 = vmatprep.subr.mxu0 0.0
    %70 = vmatpush1.msra.mxu0 0.0
    %71 = vmatprep.subr.mxu0 0.0
    %72 = vmatpush1.msra.mxu0 0.0
    %73 = vmatprep.subr.mxu0 0.0
    %74 = vmatpush1.msra.mxu0 0.0
    %75 = vmatprep.subr.mxu0 0.0
    %76 = vmatpush1.msra.mxu0 0.0
    %77 = vmatprep.subr.mxu0 0.0
    %78 = vmatpush1.msra.mxu0 0.0
    %79 = vmatprep.subr.mxu0 0.0
    %80 = vmatpush1.msra.mxu0 0.0
    %81 = vmatprep.subr.mxu0 0.0
    %82 = vmatpush1.msra.mxu0 0.0
    %83 = vmatprep.subr.mxu0 0.0
    %84 = vmatpush1.msra.mxu0 0.0
    %85 = vmatprep.subr.mxu0 0.0
    %86 = vmatpush1.msra.mxu0 0.0
    %87 = vmatprep.subr.mxu0 0.0
    %88 = vmatpush1.msra.mxu0 0.0
    %89 = vmatprep.subr.mxu0 0.0
    %90 = vmatpush1.msra.mxu0 0.0
    %91 = vmatprep.subr.mxu0 0.0
    %92 = vmatpush1.msra.mxu0 0.0
    %93 = vmatprep.subr.mxu0 0.0
    %94 = vmatpush1.msra.mxu0 0.0
    %95 = vmatprep.subr.mxu0 0.0
    %96 = vmatpush1.msra.mxu0 0.0
    %97 = vmatprep.subr.mxu0 0.0
    %98 = vmatpush1.msra.mxu0 0.0
    %99 = vmatprep.subr.mxu0 0.0
    %100 = vmatpush1.msra.mxu0 0.0
    %101 = vmatprep.subr.mxu0 0.0
    %102 = vmatpush1.msra.mxu0 0.0
    %103 = vmatprep.subr.mxu0 0.0
    %104 = vmatpush1.msra.mxu0 0.0
    %105 = vmatprep.subr.mxu0 0.0
    %106 = vmatpush1.msra.mxu0 0.0
    %107 = vmatprep.subr.mxu0 0.0
    %108 = vmatpush1.msra.mxu0 0.0
    %109 = vmatprep.subr.mxu0 0.0
    %110 = vmatpush1.msra.mxu0 0.0
    %111 = vmatprep.subr.mxu0 0.0
    %112 = vmatpush1.msra.mxu0 0.0
    %113 = vmatprep.subr.mxu0 0.0
    %114 = vmatpush1.msra.mxu0 0.0
    %115 = vmatprep.subr.mxu0 0.0
    %116 = vmatpush1.msra.mxu0 0.0
    %117 = vmatprep.mubr.f32.mxu0 0.0
    %118 = vmatmul.mubr.f32.gmra.mrb[0].mxu0 %v51
    %v119 = vpop.f32.mrb[0].mxu0
    %v120 = vadd.f32 %v47, %v119
    %v121 = vpop.f32.mrb[0].mxu0
    %122 = vdwg.mxu0
    %v123 = vmax.f32 %v120, 0.0
    %v124 = vld [vmem:[%s3] sm:$0xff]
    %v125 = vld [vmem:[%s3 + $0x8] sm:$0xff]
    %v126 = vld [vmem:[%s3 + $0x10] sm:$0xff]
    %v127 = vld [vmem:[%s3 + $0x18] sm:$0xff]
    %v128 = vld [vmem:[%s3 + $0x20] sm:$0xff]
    %v129 = vld [vmem:[%s3 + $0x28] sm:$0xff]
    %v130 = vld [vmem:[%s3 + $0x30] sm:$0xff]
    %v131 = vld [vmem:[%s3 + $0x38] sm:$0xff]
    %v132 = vld [vmem:[%s3 + $0x40] sm:$0xff]
    %v133 = vld [vmem:[%s3 + $0x48] sm:$0xff]
    %v134 = vld [vmem:[%s3 + $0x50] sm:$0xff]
    %v135 = vld [vmem:[%s3 + $0x58] sm:$0xff]
    %v136 = vld [vmem:[%s3 + $0x60] sm:$0xff]
    %v137 = vld [vmem:[%s3 + $0x68] sm:$0xff]
    %v138 = vld [vmem:[%s3 + $0x70] sm:$0xff]
    %v139 = vld [vmem:[%s3 + $0x78] sm:$0xff]
    %v140 = vld [vmem:[%s4] sm:$0x1]
    %v142 = vlaneseq
    %v143 = vshrl.u32 %v142, 7
    %v144 = vsub.s32 0, %v143
    %v145 = vrot.slane %v140, %v144
    %147 = vmatprep.subr.mxu0 0.0
    %148 = vmatpush1.msra.mxu0 %v124
    %149 = vmatprep.subr.mxu0 0.0
    %150 = vmatpush1.msra.mxu0 %v125
    %151 = vmatprep.subr.mxu0 0.0
    %152 = vmatpush1.msra.mxu0 %v126
    %153 = vmatprep.subr.mxu0 0.0
    %154 = vmatpush1.msra.mxu0 %v127
    %155 = vmatprep.subr.mxu0 0.0
    %156 = vmatpush1.msra.mxu0 %v128
    %157 = vmatprep.subr.mxu0 0.0
    %158 = vmatpush1.msra.mxu0 %v129
    %159 = vmatprep.subr.mxu0 0.0
    %160 = vmatpush1.msra.mxu0 %v130
    %161 = vmatprep.subr.mxu0 0.0
    %162 = vmatpush1.msra.mxu0 %v131
    %163 = vmatprep.subr.mxu0 0.0
    %164 = vmatpush1.msra.mxu0 %v132
    %165 = vmatprep.subr.mxu0 0.0
    %166 = vmatpush1.msra.mxu0 %v133
    %167 = vmatprep.subr.mxu0 0.0
    %168 = vmatpush1.msra.mxu0 %v134
    %169 = vmatprep.subr.mxu0 0.0
    %170 = vmatpush1.msra.mxu0 %v135
    %171 = vmatprep.subr.mxu0 0.0
    %172 = vmatpush1.msra.mxu0 %v136
    %173 = vmatprep.subr.mxu0 0.0
    %174 = vmatpush1.msra.mxu0 %v137
    %175 = vmatprep.subr.mxu0 0.0
    %176 = vmatpush1.msra.mxu0 %v138
    %177 = vmatprep.subr.mxu0 0.0
    %178 = vmatpush1.msra.mxu0 %v139
    %179 = vmatprep.subr.mxu0 0.0
    %180 = vmatpush1.msra.mxu0 0.0
    %181 = vmatprep.subr.mxu0 0.0
    %182 = vmatpush1.msra.mxu0 0.0
    %183 = vmatprep.subr.mxu0 0.0
    %184 = vmatpush1.msra.mxu0 0.0
    %185 = vmatprep.subr.mxu0 0.0
    %186 = vmatpush1.msra.mxu0 0.0
    %187 = vmatprep.subr.mxu0 0.0
    %188 = vmatpush1.msra.mxu0 0.0
    %189 = vmatprep.subr.mxu0 0.0
    %190 = vmatpush1.msra.mxu0 0.0
    %191 = vmatprep.subr.mxu0 0.0
    %192 = vmatpush1.msra.mxu0 0.0
    %193 = vmatprep.subr.mxu0 0.0
    %194 = vmatpush1.msra.mxu0 0.0
    %195 = vmatprep.subr.mxu0 0.0
    %196 = vmatpush1.msra.mxu0 0.0
    %197 = vmatprep.subr.mxu0 0.0
    %198 = vmatpush1.msra.mxu0 0.0
    %199 = vmatprep.subr.mxu0 0.0
    %200 = vmatpush1.msra.mxu0 0.0
    %201 = vmatprep.subr.mxu0 0.0
    %202 = vmatpush1.msra.mxu0 0.0
    %203 = vmatprep.subr.mxu0 0.0
    %204 = vmatpush1.msra.mxu0 0.0
    %205 = vmatprep.subr.mxu0 0.0
    %206 = vmatpush1.msra.mxu0 0.0
    %207 = vmatprep.subr.mxu0 0.0
    %208 = vmatpush1.msra.mxu0 0.0
    %209 = vmatprep.subr.mxu0 0.0
    %210 = vmatpush1.msra.mxu0 0.0
    %211 = vmatprep.mubr.f32.mxu0 0.0
    %212 = vmatmul.mubr.f32.gmra.mrb[0].mxu0 %v123
    %v213 = vpop.f32.mrb[0].mxu0
    %v214 = vadd.f32 %v145, %v213
    %v215 = vpop.f32.mrb[0].mxu0
    %216 = vdwg.mxu0
    %v217 = vmax.f32 %v214, 0.0
    %v218 = vld [vmem:[%s5] sm:$0xff]
    %v219 = vld [vmem:[%s5 + $0x8] sm:$0xff]
    %v220 = vld [vmem:[%s5 + $0x10] sm:$0xff]
    %v221 = vld [vmem:[%s5 + $0x18] sm:$0xff]
    %v222 = vld [vmem:[%s5 + $0x20] sm:$0xff]
    %v223 = vld [vmem:[%s5 + $0x28] sm:$0xff]
    %v224 = vld [vmem:[%s5 + $0x30] sm:$0xff]
    %v225 = vld [vmem:[%s5 + $0x38] sm:$0xff]
    %v226 = vld [vmem:[%s5 + $0x40] sm:$0xff]
    %v227 = vld [vmem:[%s5 + $0x48] sm:$0xff]
    %v228 = vld [vmem:[%s5 + $0x50] sm:$0xff]
    %v229 = vld [vmem:[%s5 + $0x58] sm:$0xff]
    %v230 = vld [vmem:[%s5 + $0x60] sm:$0xff]
    %v231 = vld [vmem:[%s5 + $0x68] sm:$0xff]
    %v232 = vld [vmem:[%s5 + $0x70] sm:$0xff]
    %v233 = vld [vmem:[%s5 + $0x78] sm:$0xff]
    %v234 = vld [vmem:[%s6] sm:$0x1]
    %v236 = vlaneseq
    %v237 = vshrl.u32 %v236, 7
    %v238 = vsub.s32 0, %v237
    %v239 = vrot.slane %v234, %v238
    %241 = vmatprep.subr.mxu0 0.0
    %242 = vmatpush1.msra.mxu0 %v218
    %243 = vmatprep.subr.mxu0 0.0
    %244 = vmatpush1.msra.mxu0 %v219
    %245 = vmatprep.subr.mxu0 0.0
    %246 = vmatpush1.msra.mxu0 %v220
    %247 = vmatprep.subr.mxu0 0.0
    %248 = vmatpush1.msra.mxu0 %v221
    %249 = vmatprep.subr.mxu0 0.0
    %250 = vmatpush1.msra.mxu0 %v222
    %251 = vmatprep.subr.mxu0 0.0
    %252 = vmatpush1.msra.mxu0 %v223
    %253 = vmatprep.subr.mxu0 0.0
    %254 = vmatpush1.msra.mxu0 %v224
    %255 = vmatprep.subr.mxu0 0.0
    %256 = vmatpush1.msra.mxu0 %v225
    %257 = vmatprep.subr.mxu0 0.0
    %258 = vmatpush1.msra.mxu0 %v226
    %259 = vmatprep.subr.mxu0 0.0
    %260 = vmatpush1.msra.mxu0 %v227
    %261 = vmatprep.subr.mxu0 0.0
    %262 = vmatpush1.msra.mxu0 %v228
    %263 = vmatprep.subr.mxu0 0.0
    %264 = vmatpush1.msra.mxu0 %v229
    %265 = vmatprep.subr.mxu0 0.0
    %266 = vmatpush1.msra.mxu0 %v230
    %267 = vmatprep.subr.mxu0 0.0
    %268 = vmatpush1.msra.mxu0 %v231
    %269 = vmatprep.subr.mxu0 0.0
    %270 = vmatpush1.msra.mxu0 %v232
    %271 = vmatprep.subr.mxu0 0.0
    %272 = vmatpush1.msra.mxu0 %v233
    %273 = vmatprep.subr.mxu0 0.0
    %274 = vmatpush1.msra.mxu0 0.0
    %275 = vmatprep.subr.mxu0 0.0
    %276 = vmatpush1.msra.mxu0 0.0
    %277 = vmatprep.subr.mxu0 0.0
    %278 = vmatpush1.msra.mxu0 0.0
    %279 = vmatprep.subr.mxu0 0.0
    %280 = vmatpush1.msra.mxu0 0.0
    %281 = vmatprep.subr.mxu0 0.0
    %282 = vmatpush1.msra.mxu0 0.0
    %283 = vmatprep.subr.mxu0 0.0
    %284 = vmatpush1.msra.mxu0 0.0
    %285 = vmatprep.subr.mxu0 0.0
    %286 = vmatpush1.msra.mxu0 0.0
    %287 = vmatprep.subr.mxu0 0.0
    %288 = vmatpush1.msra.mxu0 0.0
    %289 = vmatprep.subr.mxu0 0.0
    %290 = vmatpush1.msra.mxu0 0.0
    %291 = vmatprep.subr.mxu0 0.0
    %292 = vmatpush1.msra.mxu0 0.0
    %293 = vmatprep.subr.mxu0 0.0
    %294 = vmatpush1.msra.mxu0 0.0
    %295 = vmatprep.subr.mxu0 0.0
    %296 = vmatpush1.msra.mxu0 0.0
    %297 = vmatprep.subr.mxu0 0.0
    %298 = vmatpush1.msra.mxu0 0.0
    %299 = vmatprep.subr.mxu0 0.0
    %300 = vmatpush1.msra.mxu0 0.0
    %301 = vmatprep.subr.mxu0 0.0
    %302 = vmatpush1.msra.mxu0 0.0
    %303 = vmatprep.subr.mxu0 0.0
    %304 = vmatpush1.msra.mxu0 0.0
    %305 = vmatprep.mubr.f32.mxu0 0.0
    %306 = vmatmul.mubr.f32.gmra.mrb[0].mxu0 %v217
    %v307 = vpop.f32.mrb[0].mxu0
    %v308 = vadd.f32 %v239, %v307
    %v309 = vpop.f32.mrb[0].mxu0
    %310 = vdwg.mxu0
    %v311 = vlaneseq
    %v312 = vand.u32 %v311, 127
    %vm313 = vcmp.lt.s32.totalorder %v312, 4
    %v314 = vsel %vm313, %v308, -inf
    %vm315 = vcmask 39936
    %v316 = vsel %vm315, %v314, -inf
    %317 = vmax.xlane.f32.xlu0 %v316
    %v318 = vpop.xlane.xlu0 %317
    %v319 = vsub.f32 %v314, %v318
    %v320 = vmul.f32 %v319, 1.442695
    %v321 = vpow.pop %v320
    %v322 = vsel %vm315, %v321, 0.0
    %323 = vadd.xlane.f32.xlu0 %v322
    %v324 = vpop.xlane.xlu0 %323
    %v325 = vrcp.pop %v324
    %v326 = vmul.f32 %v321, %v325
    %v327 = vsel %vm313, %v326, %v308
    %328 = vst.msk [vmem:[#allocation5] sm:$0xff] %vm315, %v327
    // Predicated region
    $region34: #{tpu_custom_call.1} parent=1 // pred_check
      _
    $region35: #{tpu_custom_call.1} parent=1 // pred_check_branch
      %330 = sbr.rel (0) target = $region37
    $region36: #{tpu_custom_call.1} parent=1 // pred_region
      %s332 = ssub.s32 128, 128
      %333 = vsyncadd [#allocation4], %s332
      %s335 = sshll.u32 [#allocation5], 4
      %s336 = int_to_ptr.vmem [resolvable:$true] %s335
      %338 = dma.vmem_to_hbm [thread:$0]  %s336, 128, %s7, [#allocation4]
    $region37: #{tpu_custom_call.1} parent=1 // pred_fallthru
      _
    // Predicated region
    $region38: #{tpu_custom_call.1} parent=1 // pred_check
      _
    $region39: #{tpu_custom_call.1} parent=1 // pred_check_branch
      %340 = sbr.rel (0) target = $region41
    $region40: #{tpu_custom_call.1} parent=1 // pred_region
      %341 = dma.done [#allocation4], 128
    $region41: #{tpu_custom_call.1} parent=1 // pred_fallthru
      _
    %342 = vsyncpa [#allocation3], 1
    %343 = vsyncpa [#allocation4], 1

</llo_original>
